<compile_context>
chip_gen: v5e
topology: v5e:2x2
jax: 0.10.0
libtpu: 0.0.40
codegen_flags: <defaults>
</compile_context>

<pallas_src>
import functools
import math

import jax
import jax.numpy as jnp
from jax.experimental import pallas as pl
from jax.experimental.pallas import tpu as pltpu

LANE = 128
# Candidate trailing widths for the flat slab (wide & lane-dense preferred).
_WIDTH_CANDIDATES = (4096, 2048, 1024, 512, 256, 128)
# Per-block byte budget (see VMEM accounting in the header comment).
_TARGET_BLOCK_BYTES = 2 * 1024 * 1024
# Row-tile granularity: multiple of 32 covers f32/bf16/int8 sublane packing.
_ROW_ALIGN = 32
# Max element count for the single-block ragged path: a (1, N) block costs
# ~N * 32 bytes of VMEM (one sublane row per vreg), so 65536 -> 2 MiB/buffer.
_RAGGED_SINGLE_BLOCK_ELEMS = 65536


def _copy_kernel(x_ref, o_ref):
    # A contiguous `view` implies no arithmetic: the only work is the tile
    # copy that materializes the output buffer.
    o_ref[...] = x_ref[...]


def _copy_slab(slab):
    """Copy a 2-D slab through VMEM using large lane-dense tiles."""
    rows, width = slab.shape
    itemsize = jnp.dtype(slab.dtype).itemsize
    total_bytes = rows * width * itemsize

    if total_bytes <= _TARGET_BLOCK_BYTES:
        # Small tensor: one whole-array block; grid machinery would be pure
        # overhead.  Full-dim blocks are exempt from the (8,128) rule.
        return pl.pallas_call(
            _copy_kernel,
            out_shape=jax.ShapeDtypeStruct((rows, width), slab.dtype),
            grid_spec=pltpu.PrefetchScalarGridSpec(
                num_scalar_prefetch=0,
                grid=(1,),
                in_specs=[pl.BlockSpec((rows, width), lambda i: (0, 0))],
                out_specs=pl.BlockSpec((rows, width), lambda i: (0, 0)),
            ),
        )(slab)

    # Large tensor: tile over rows with ~_TARGET_BLOCK_BYTES blocks.
    row_bytes = width * itemsize
    block_rows = _TARGET_BLOCK_BYTES // row_bytes
    block_rows = max(_ROW_ALIGN, (block_rows // _ROW_ALIGN) * _ROW_ALIGN)
    block_rows = min(block_rows, rows)
    grid = (pl.cdiv(rows, block_rows),)  # partial last block is masked by Pallas
    return pl.pallas_call(
        _copy_kernel,
        out_shape=jax.ShapeDtypeStruct((rows, width), slab.dtype),
        grid_spec=pltpu.PrefetchScalarGridSpec(
            num_scalar_prefetch=0,
            grid=grid,
            in_specs=[pl.BlockSpec((block_rows, width), lambda i: (i, 0))],
            out_specs=pl.BlockSpec((block_rows, width), lambda i: (i, 0)),
        ),
        compiler_params=pltpu.CompilerParams(
            dimension_semantics=("parallel",),
        ),
    )(slab)


@functools.partial(jax.jit, static_argnames=("target_shape",))
def _reshape_impl(x, target_shape):
    total = math.prod(x.shape)
    flat = jnp.reshape(x, (total,))  # metadata-only relabel of row-major order

    # Fast path: pick the widest lane-dense slab width that divides exactly,
    # so no padding / slicing is needed around the kernel.
    width = next((w for w in _WIDTH_CANDIDATES if total % w == 0), None)
    if width is not None:
        slab = jnp.reshape(flat, (total // width, width))
        return jnp.reshape(_copy_slab(slab), target_shape)

    # Ragged total (not a multiple of 128).
    if total <= _RAGGED_SINGLE_BLOCK_ELEMS:
        # Single full-array block of shape (1, total): exempt from (8,128),
        # still no pad / slice.
        return jnp.reshape(_copy_slab(jnp.reshape(flat, (1, total))), target_shape)

    # Rare fallback: large tensor whose element count is not a multiple of 128.
    # TODO(synk): handle the ragged tail with an in-kernel masked store to avoid
    # the extra pad + slice HBM traffic.
    rows = pl.cdiv(total, LANE)
    padded = rows * LANE
    slab = jnp.reshape(jnp.pad(flat, (0, padded - total)), (rows, LANE))
    out_flat = jnp.reshape(_copy_slab(slab), (padded,))
    return jnp.reshape(out_flat[:total], target_shape)


def _resolve_shape(total, args):
    """Mimic torch.view shape resolution, including a single -1."""
    args = tuple(int(a) for a in args)
    if args.count(-1) > 1:
        raise ValueError("only one dimension can be inferred")
    if -1 in args:
        known = 1
        for a in args:
            if a != -1:
                known *= a
        if known == 0 or total % known != 0:
            raise ValueError(f"cannot reshape {total} elements into {args}")
        args = tuple(total // known if a == -1 else a for a in args)
    if math.prod(args) != total:
        raise ValueError(f"cannot reshape {total} elements into {args}")
    return args


class Reshape:
    """Pallas-backed equivalent of the PyTorch Reshape module (x.view(*args))."""

    def __init__(self, *args):
        self.args = args

    def __call__(self, x):
        total = math.prod(x.shape)
        target_shape = _resolve_shape(total, self.args)
        if total == 0:
            return jnp.reshape(x, target_shape)  # nothing to copy
        return _reshape_impl(x, target_shape=target_shape)


if __name__ == "__main__":
    key = jax.random.PRNGKey(0)
    k1, k2, k3 = jax.random.split(key, 3)

    # Primary case (typical use: flatten per-sample features, x.view(B, -1)).
    x = jax.random.normal(k1, (2, 4, 16, 16), dtype=jnp.float32)
    y = Reshape(2, -1)(x)
    jax.block_until_ready(y)
    assert y.shape == (2, 4 * 16 * 16), y.shape
    assert y.dtype == x.dtype
    assert bool(jnp.array_equal(y, jnp.reshape(x, (2, -1))))

    # Tiled-grid path (multiple ~2 MiB blocks).
    x2 = jax.random.normal(k2, (4, 256, 1024), dtype=jnp.float32)
    y2 = Reshape(-1, 1024)(x2)
    jax.block_until_ready(y2)
    assert y2.shape == (1024, 1024)
    assert bool(jnp.array_equal(y2, jnp.reshape(x2, (-1, 1024))))

    # Ragged path (element count not a multiple of 128).
    x3 = jax.random.normal(k3, (3, 5, 7), dtype=jnp.float32)
    y3 = Reshape(-1)(x3)
    jax.block_until_ready(y3)
    assert y3.shape == (105,)
    assert bool(jnp.array_equal(y3, jnp.reshape(x3, (-1,))))

    print("KERNEL_OK")
</pallas_src>

<mosaic_0001>
module attributes {stable_mosaic.version = 11 : i64} {
  func.func @_copy_kernel(%arg0: i32, %arg1: memref<1x2048xf32, #tpu.memory_space<vmem>>, %arg2: memref<1x2048xf32, #tpu.memory_space<vmem>>) attributes {dimension_semantics = [#tpu.dimension_semantics<arbitrary>], iteration_bounds = array<i64: 1>, scalar_prefetch = 0 : i64, scratch_operands = 0 : i64, tpu.core_type = #tpu.core_type<tc>, window_params = [{pipeline_mode = #tpu.pipeline_mode<synchronous>, transform_indices = @transform_0, window_bounds = array<i64: 1, 2048>}, {pipeline_mode = #tpu.pipeline_mode<synchronous>, transform_indices = @transform_1, window_bounds = array<i64: 1, 2048>}]} {
    %c0 = arith.constant 0 : index
    %c0_0 = arith.constant 0 : index
    %0 = vector.load %arg1[%c0, %c0_0] : memref<1x2048xf32, #tpu.memory_space<vmem>>, vector<1x2048xf32>
    %c0_1 = arith.constant 0 : index
    %c0_2 = arith.constant 0 : index
    %1 = vector.load %arg2[%c0_1, %c0_2] : memref<1x2048xf32, #tpu.memory_space<vmem>>, vector<1x2048xf32>
    tpu.vector_store %arg2[%c0_1, %c0_2], %0 {strides = array<i32>} : memref<1x2048xf32, #tpu.memory_space<vmem>>, vector<1x2048xf32>,
    return
  }
  func.func @transform_0(%arg0: i32) -> (i32, i32) {
    %c0_i32 = arith.constant 0 : i32
    %c0_i32_0 = arith.constant 0 : i32
    %c0_i32_1 = arith.constant 0 : i32
    return %c0_i32, %c0_i32_0 : i32, i32
  }
  func.func @transform_1(%arg0: i32) -> (i32, i32) {
    %c0_i32 = arith.constant 0 : i32
    %c0_i32_0 = arith.constant 0 : i32
    %c0_i32_1 = arith.constant 0 : i32
    return %c0_i32, %c0_i32_0 : i32, i32
  }
}

</mosaic_0001>

<llo_original>
// kernel: _reshape_impl.1
$region0: #{_reshape_impl.1}
  #allocation0 [shape = 'u32[]', space=smem, size = 0x4, offset = 0x4, fixed_abs, tag = 'smem constant byte address 0x4 - core index']
  #allocation1 [shape = 'u32[72,128]{1,0:T(1,128)}', space=vmem, size = 0x9000, scoped, tag = 'internal scratch']
  %s0 = inlined_call_operand.vmem [shape: f32[1,2048], index: 0, kind: input, shape index: {}]
  %s1 = inlined_call_operand.vmem [shape: f32[1,2048], index: 1, kind: output, shape index: {}]
  %s2 = sld [smem:[#allocation0]]
  $region14: #{_reshape_impl.1} parent=0
    _
  %s4 = ssub.s32 1, %s2
  %s5 = scalar_select 0, %s4, %s2
  // Predicated region
  $region2: #{_reshape_impl.1} parent=0 // pred_check
    _
  $region3: #{_reshape_impl.1} parent=0 // pred_check_branch
    %7 = sbr.rel (0) target = $region5
  $region4: #{_reshape_impl.1} parent=0 // pred_region
    _
  $region5: #{_reshape_impl.1} parent=0 // pred_fallthru
    _
  %v8 = vld [vmem:[%s0] sm:$0xff]
  %v9 = vld [vmem:[%s0 + $0x8] sm:$0xff]
  %10 = vst [vmem:[%s1] sm:$0xff] %v8
  %11 = vst [vmem:[%s1 + $0x8] sm:$0xff] %v9
  // Predicated region
  $region6: #{_reshape_impl.1} parent=0 // pred_check
    _
  $region7: #{_reshape_impl.1} parent=0 // pred_check_branch
    %13 = sbr.rel (0) target = $region9
  $region8: #{_reshape_impl.1} parent=0 // pred_region
    _
  $region9: #{_reshape_impl.1} parent=0 // pred_fallthru
    _
  // Predicated region
  $region10: #{_reshape_impl.1} parent=0 // pred_check
    _
  $region11: #{_reshape_impl.1} parent=0 // pred_check_branch
    %15 = sbr.rel (0) target = $region13
  $region12: #{_reshape_impl.1} parent=0 // pred_region
    _
  $region13: #{_reshape_impl.1} parent=0 // pred_fallthru
    _

</llo_original>
